<compile_context>
chip_gen: v7x
topology: tpu7x:2x2x1
jax: 0.10.0
libtpu: 0.0.40
codegen_flags: <defaults>
</compile_context>

<pallas_src>
import jax
import jax.numpy as jnp
from jax.experimental import pallas as pl
from jax.experimental.pallas import tpu as pltpu

LANE = 128
SUBLANE = 8


def _round_up(n, m):
    return ((n + m - 1) // m) * m


# ----------------------------------------------------------------------------
# Kernel: one batch tile per grid step.
#   x_ref   : (TILE_B, D_in)     bf16
#   w1_ref  : (D_in, H)          bf16   backbone layer 1 weight (in, out)
#   b1_ref  : (1, H)             f32
#   w24_ref : (H, OUT)           bf16   fused (backbone layer 2 @ fc4) weight
#   b24_ref : (1, OUT)           f32    fused bias
#   o_ref   : (TILE_B, OUT)      f32
# ----------------------------------------------------------------------------
def bnet_kernel(x_ref, w1_ref, b1_ref, w24_ref, b24_ref, o_ref):
    # backbone layer 1: bf16 MXU dot with f32 accumulate, bias + ReLU in f32
    h = jnp.dot(x_ref[...], w1_ref[...], preferred_element_type=jnp.float32)
    h = jnp.maximum(h + b1_ref[...], 0.0)
    # fused backbone-layer-2 + fc4: bf16 MXU dot, f32 accumulate, f32 bias
    out = jnp.dot(h.astype(jnp.bfloat16), w24_ref[...],
                  preferred_element_type=jnp.float32) + b24_ref[...]
    o_ref[...] = out.astype(o_ref.dtype)


def prepare_params(params):
    """Fold fc2+fc4 into one linear layer; weights -> bf16, biases stay f32."""
    w1, b1, w2, b2, w4, b4 = params
    # Exact algebraic fusion (no nonlinearity between feat = h@w2+b2 and
    # out = feat@w4+b4):
    w24 = w2 @ w4            # (H, 2)
    b24 = b2 @ w4 + b4       # (1, 2)
    fused = (w1.astype(jnp.bfloat16),
             b1.astype(jnp.float32),
             w24.astype(jnp.bfloat16),
             b24.astype(jnp.float32))
    return fused, int(w24.shape[1])


def bnet_forward(x, fused_params, out_dim, *, tile_b=1024,
                 min_pallas_rows=1024, force_pallas=False):
    w1, b1, w24, b24 = fused_params
    B, d_in = x.shape
    hidden = w1.shape[1]

    # Small-batch fallback: at tiny B the fixed pallas_call + DMA setup
    # overhead dwarfs the work; XLA fusion is as fast and skips padding.
    if B < min_pallas_rows and not force_pallas:
        h = jnp.maximum(x @ w1.astype(jnp.float32) + b1, 0.0)
        return h @ w24.astype(jnp.float32) + b24

    # Batch tile: multiple of 8 sublanes, capped at tile_b.
    b8 = _round_up(B, SUBLANE)
    tb = min(tile_b, b8)
    # v7x: guarantee >= 2 grid steps (when the batch allows it) so the
    # "parallel" batch axis can be sharded across both TensorCores.
    if b8 > SUBLANE and pl.cdiv(b8, tb) < 2:
        tb = max(SUBLANE, _round_up(pl.cdiv(b8, 2), SUBLANE))
    bpad = _round_up(B, tb)
    grid = (bpad // tb,)

    # Pad only the batch rows (no lane padding), cast to bf16.
    xp = jnp.pad(x.astype(jnp.bfloat16), ((0, bpad - B), (0, 0)))

    # VMEM budget: every block double-buffered (a constant index_map does NOT
    # imply single buffering), plus in-flight f32 intermediates, 2x headroom.
    vmem_bytes = 2 * (tb * d_in * 2            # x tile (bf16)
                      + d_in * hidden * 2      # w1 (bf16)
                      + hidden * 4             # b1 (f32)
                      + hidden * out_dim * 2   # w24 (bf16)
                      + out_dim * 4            # b24 (f32)
                      + tb * out_dim * 4)      # out tile (f32)
    vmem_bytes += tb * hidden * 4 + tb * out_dim * 4
    vmem_limit = max(2 * vmem_bytes, 4 << 20)

    out_padded = pl.pallas_call(
        bnet_kernel,
        out_shape=jax.ShapeDtypeStruct((bpad, out_dim), jnp.float32),
        grid=grid,
        in_specs=[
            # NOTE: if a profile ever shows exposed x DMA at large tiles, add
            # pipeline_mode=pl.Buffered(3) on this spec; weights stay resident.
            pl.BlockSpec((tb, d_in), lambda i: (i, 0)),         # x: batch tile
            pl.BlockSpec((d_in, hidden), lambda i: (0, 0)),     # w1 (resident)
            pl.BlockSpec((1, hidden), lambda i: (0, 0)),        # b1
            pl.BlockSpec((hidden, out_dim), lambda i: (0, 0)),  # w24 (fused)
            pl.BlockSpec((1, out_dim), lambda i: (0, 0)),       # b24 (fused)
        ],
        out_specs=pl.BlockSpec((tb, out_dim), lambda i: (i, 0)),
        compiler_params=pltpu.CompilerParams(
            dimension_semantics=("parallel",),
            vmem_limit_bytes=int(vmem_limit),
        ),
    )(xp, w1, b1, w24, b24)

    # Slice away batch padding (no lane padding to remove).
    return out_padded[:B]


def init_params(d_in=32, hidden=32, feat=10, out=2):
    """Deterministic synthetic parameter init (no checkpoint load)."""
    keys = jax.random.split(jax.random.PRNGKey(42), 6)
    # Weights stored (in_features, out_features), i.e. PyTorch W transposed.
    w1 = jax.random.normal(keys[0], (d_in, hidden), jnp.float32) * 0.1
    b1 = jax.random.normal(keys[1], (1, hidden), jnp.float32) * 0.01
    w2 = jax.random.normal(keys[2], (hidden, feat), jnp.float32) * 0.1
    b2 = jax.random.normal(keys[3], (1, feat), jnp.float32) * 0.01
    w4 = jax.random.normal(keys[4], (feat, out), jnp.float32) * 0.1
    b4 = jax.random.normal(keys[5], (1, out), jnp.float32) * 0.01
    return (w1, b1, w2, b2, w4, b4)


def bnet_reference(x, params):
    """Pure-JAX f32 reference (unfused) for correctness check."""
    w1, b1, w2, b2, w4, b4 = params
    h = jnp.maximum(x @ w1 + b1, 0.0)
    feat = h @ w2 + b2
    return feat @ w4 + b4


if __name__ == "__main__":
    D_IN, HIDDEN, FEAT, OUT = 32, 32, 10, 2
    params = init_params(d_in=D_IN, hidden=HIDDEN, feat=FEAT, out=OUT)
    fused_params, out_dim = prepare_params(params)

    key = jax.random.PRNGKey(0)
    for B in (8, 300):  # grid=(1,) case and multi-step / padded-batch case
        x = jax.random.normal(jax.random.fold_in(key, B), (B, D_IN), jnp.float32)

        out = bnet_forward(x, fused_params, out_dim, force_pallas=True)
        out = jax.block_until_ready(out)

        ref = bnet_reference(x, params)
        assert out.shape == (B, OUT), out.shape
        # bf16 weights/activations: loosened tolerance vs f32 reference.
        assert jnp.allclose(out, ref, atol=1e-2, rtol=1e-2), (
            f"mismatch vs reference at B={B}: "
            f"max abs err {float(jnp.max(jnp.abs(out - ref)))}")

        # Also exercise the small-batch XLA fallback path.
        out_fb = jax.block_until_ready(bnet_forward(x, fused_params, out_dim))
        assert jnp.allclose(out_fb, ref, atol=1e-2, rtol=1e-2)

    print("KERNEL_OK")
</pallas_src>

<mosaic_0001>
module attributes {stable_mosaic.version = 11 : i64} {
  func.func @bnet_kernel(%arg0: i32, %arg1: memref<8x32xbf16, #tpu.memory_space<vmem>>, %arg2: memref<32x32xbf16, #tpu.memory_space<vmem>>, %arg3: memref<1x32xf32, #tpu.memory_space<vmem>>, %arg4: memref<32x2xbf16, #tpu.memory_space<vmem>>, %arg5: memref<1x2xf32, #tpu.memory_space<vmem>>, %arg6: memref<8x2xf32, #tpu.memory_space<vmem>>) attributes {dimension_semantics = [#tpu.dimension_semantics<parallel>], iteration_bounds = array<i64: 1>, scalar_prefetch = 0 : i64, scratch_operands = 0 : i64, tpu.core_type = #tpu.core_type<tc>, window_params = [{transform_indices = @transform_0, window_bounds = array<i64: 8, 32>}, {pipeline_mode = #tpu.pipeline_mode<synchronous>, transform_indices = @transform_1, window_bounds = array<i64: 32, 32>}, {pipeline_mode = #tpu.pipeline_mode<synchronous>, transform_indices = @transform_2, window_bounds = array<i64: 1, 32>}, {pipeline_mode = #tpu.pipeline_mode<synchronous>, transform_indices = @transform_3, window_bounds = array<i64: 32, 2>}, {pipeline_mode = #tpu.pipeline_mode<synchronous>, transform_indices = @transform_4, window_bounds = array<i64: 1, 2>}, {transform_indices = @transform_5, window_bounds = array<i64: 8, 2>}]} {
    %c0 = arith.constant 0 : index
    %c0_0 = arith.constant 0 : index
    %0 = vector.load %arg1[%c0, %c0_0] : memref<8x32xbf16, #tpu.memory_space<vmem>>, vector<8x32xbf16>
    %c0_1 = arith.constant 0 : index
    %c0_2 = arith.constant 0 : index
    %1 = vector.load %arg2[%c0_1, %c0_2] : memref<32x32xbf16, #tpu.memory_space<vmem>>, vector<32x32xbf16>
    %cst = arith.constant dense<0.000000e+00> : vector<8x32xf32>
    %2 = tpu.matmul %0, %1, %cst {dimension_numbers = #tpu.dot_dimension_numbers<[1], [0], [0], [1], [0, 0, 1, 1], [], []>} : vector<8x32xbf16>, vector<32x32xbf16>, vector<8x32xf32> -> vector<8x32xf32>
    %c0_3 = arith.constant 0 : index
    %c0_4 = arith.constant 0 : index
    %3 = vector.load %arg3[%c0_3, %c0_4] : memref<1x32xf32, #tpu.memory_space<vmem>>, vector<1x32xf32>
    %4 = vector.broadcast %3 : vector<1x32xf32> to vector<8x32xf32>
    %5 = arith.addf %2, %4 : vector<8x32xf32>
    %cst_5 = arith.constant 0.000000e+00 : f32
    %6 = vector.broadcast %cst_5 : f32 to vector<8x32xf32>
    %7 = arith.maximumf %5, %6 : vector<8x32xf32>
    %8 = arith.truncf %7 : vector<8x32xf32> to vector<8x32xbf16>
    %c0_6 = arith.constant 0 : index
    %c0_7 = arith.constant 0 : index
    %9 = vector.load %arg4[%c0_6, %c0_7] : memref<32x2xbf16, #tpu.memory_space<vmem>>, vector<32x2xbf16>
    %cst_8 = arith.constant dense<0.000000e+00> : vector<8x2xf32>
    %10 = tpu.matmul %8, %9, %cst_8 {dimension_numbers = #tpu.dot_dimension_numbers<[1], [0], [0], [1], [0, 0, 1, 1], [], []>} : vector<8x32xbf16>, vector<32x2xbf16>, vector<8x2xf32> -> vector<8x2xf32>
    %c0_9 = arith.constant 0 : index
    %c0_10 = arith.constant 0 : index
    %11 = vector.load %arg5[%c0_9, %c0_10] : memref<1x2xf32, #tpu.memory_space<vmem>>, vector<1x2xf32>
    %12 = vector.broadcast %11 : vector<1x2xf32> to vector<8x2xf32>
    %13 = arith.addf %10, %12 : vector<8x2xf32>
    %c0_11 = arith.constant 0 : index
    %c0_12 = arith.constant 0 : index
    %14 = vector.load %arg6[%c0_11, %c0_12] : memref<8x2xf32, #tpu.memory_space<vmem>>, vector<8x2xf32>
    tpu.vector_store %arg6[%c0_11, %c0_12], %13 {strides = array<i32>} : memref<8x2xf32, #tpu.memory_space<vmem>>, vector<8x2xf32>,
    return
  }
  func.func @transform_0(%arg0: i32) -> (i32, i32) {
    %c0_i32 = arith.constant 0 : i32
    %c0_i32_0 = arith.constant 0 : i32
    return %arg0, %c0_i32 : i32, i32
  }
  func.func @transform_1(%arg0: i32) -> (i32, i32) {
    %c0_i32 = arith.constant 0 : i32
    %c0_i32_0 = arith.constant 0 : i32
    %c0_i32_1 = arith.constant 0 : i32
    return %c0_i32, %c0_i32_0 : i32, i32
  }
  func.func @transform_2(%arg0: i32) -> (i32, i32) {
    %c0_i32 = arith.constant 0 : i32
    %c0_i32_0 = arith.constant 0 : i32
    %c0_i32_1 = arith.constant 0 : i32
    return %c0_i32, %c0_i32_0 : i32, i32
  }
  func.func @transform_3(%arg0: i32) -> (i32, i32) {
    %c0_i32 = arith.constant 0 : i32
    %c0_i32_0 = arith.constant 0 : i32
    %c0_i32_1 = arith.constant 0 : i32
    return %c0_i32, %c0_i32_0 : i32, i32
  }
  func.func @transform_4(%arg0: i32) -> (i32, i32) {
    %c0_i32 = arith.constant 0 : i32
    %c0_i32_0 = arith.constant 0 : i32
    %c0_i32_1 = arith.constant 0 : i32
    return %c0_i32, %c0_i32_0 : i32, i32
  }
  func.func @transform_5(%arg0: i32) -> (i32, i32) {
    %c0_i32 = arith.constant 0 : i32
    %c0_i32_0 = arith.constant 0 : i32
    return %arg0, %c0_i32 : i32, i32
  }
}

</mosaic_0001>

<llo_original>
// kernel: tpu_custom_call.1
$region0: #{tpu_custom_call.1}
  #allocation0 [shape = 'u32[]', space=smem, size = 0x4, offset = 0x4, fixed_abs, tag = 'smem constant byte address 0x4 - core index']
  #allocation1 [shape = 'u32[144,128]{1,0:T(1,128)}', space=vmem, size = 0x12000, scoped, tag = 'internal scratch']
  %s0 = inlined_call_operand.vmem [shape: bf16[8,32], index: 0, kind: input, shape index: {}]
  %s1 = inlined_call_operand.vmem [shape: bf16[32,32], index: 1, kind: input, shape index: {}]
  %s2 = inlined_call_operand.vmem [shape: f32[1,32], index: 2, kind: input, shape index: {}]
  %s3 = inlined_call_operand.vmem [shape: bf16[32,2], index: 3, kind: input, shape index: {}]
  %s4 = inlined_call_operand.vmem [shape: f32[1,2], index: 4, kind: input, shape index: {}]
  %s5 = inlined_call_operand.vmem [shape: f32[8,2], index: 5, kind: output, shape index: {}]
  %s6 = sld [smem:[#allocation0]]
  $region30: #{tpu_custom_call.1} parent=0
    _
  %s8 = ssub.s32 1, %s6
  %s9 = scalar_select 0, %s8, %s6
  // Predicated region
  $region2: #{tpu_custom_call.1} parent=0 // pred_check
    _
  $region3: #{tpu_custom_call.1} parent=0 // pred_check_branch
    %11 = sbr.rel (0) target = $region5
  $region4: #{tpu_custom_call.1} parent=0 // pred_region
    _
  $region5: #{tpu_custom_call.1} parent=0 // pred_fallthru
    _
  // Predicated region
  $region6: #{tpu_custom_call.1} parent=0 // pred_check
    _
  $region7: #{tpu_custom_call.1} parent=0 // pred_check_branch
    %13 = sbr.rel (0) target = $region9
  $region8: #{tpu_custom_call.1} parent=0 // pred_region
    _
  $region9: #{tpu_custom_call.1} parent=0 // pred_fallthru
    _
  // Predicated region
  $region10: #{tpu_custom_call.1} parent=0 // pred_check
    _
  $region11: #{tpu_custom_call.1} parent=0 // pred_check_branch
    %15 = sbr.rel (0) target = $region13
  $region12: #{tpu_custom_call.1} parent=0 // pred_region
    _
  $region13: #{tpu_custom_call.1} parent=0 // pred_fallthru
    _
  // Predicated region
  $region14: #{tpu_custom_call.1} parent=0 // pred_check
    _
  $region15: #{tpu_custom_call.1} parent=0 // pred_check_branch
    %17 = sbr.rel (0) target = $region17
  $region16: #{tpu_custom_call.1} parent=0 // pred_region
    _
  $region17: #{tpu_custom_call.1} parent=0 // pred_fallthru
    _
  // Predicated region
  $region18: #{tpu_custom_call.1} parent=0 // pred_check
    _
  $region19: #{tpu_custom_call.1} parent=0 // pred_check_branch
    %19 = sbr.rel (0) target = $region21
  $region20: #{tpu_custom_call.1} parent=0 // pred_region
    _
  $region21: #{tpu_custom_call.1} parent=0 // pred_fallthru
    _
  %v21 = vld [vmem:[%s0] sm:$0xf]
  %v22 = vld [vmem:[%s1] sm:$0xf]
  %v23 = vld [vmem:[%s1 + $0x4] sm:$0xf]
  %v24 = vld [vmem:[%s1 + $0x8] sm:$0xf]
  %v25 = vld [vmem:[%s1 + $0xc] sm:$0xf]
  %v26 = vld [vmem:[%s2] sm:$0x1]
  %v28 = vlaneseq
  %v29 = vshrl.u32 %v28, 7
  %v30 = vsub.s32 0, %v29
  %v31 = vrot.slane %v26, %v30
  %v37 = vunpack.c.l.b16 %v22
  %v38 = vunpack.c.l.b16 %v23
  %v39 = vunpack.c.l.b16 %v24
  %v40 = vunpack.c.l.b16 %v25
  %v41 = vpack.c.b16 %v38, %v37
  %v42 = vpack.c.b16 %v40, %v39
  %vm45 = vcmask 261120
  %v47 = vsel %vm45, %v21, 0
  %49 = vmatprep.subr.bf16.mxu0 0
  %50 = vmatpush1.bf16.msra.mxu0 %v41
  %51 = vmatprep.subr.bf16.mxu0 0
  %52 = vmatpush1.bf16.msra.mxu0 %v42
  %53 = vmatprep.subr.bf16.mxu0 0
  %54 = vmatpush1.bf16.msra.mxu0 0
  %55 = vmatprep.subr.bf16.mxu0 0
  %56 = vmatpush1.bf16.msra.mxu0 0
  %57 = vmatprep.subr.bf16.mxu0 0
  %58 = vmatpush1.bf16.msra.mxu0 0
  %59 = vmatprep.subr.bf16.mxu0 0
  %60 = vmatpush1.bf16.msra.mxu0 0
  %61 = vmatprep.subr.bf16.mxu0 0
  %62 = vmatpush1.bf16.msra.mxu0 0
  %63 = vmatprep.subr.bf16.mxu0 0
  %64 = vmatpush1.bf16.msra.mxu0 0
  %65 = vmatprep.subr.bf16.mxu0 0
  %66 = vmatpush1.bf16.msra.mxu0 0
  %67 = vmatprep.subr.bf16.mxu0 0
  %68 = vmatpush1.bf16.msra.mxu0 0
  %69 = vmatprep.subr.bf16.mxu0 0
  %70 = vmatpush1.bf16.msra.mxu0 0
  %71 = vmatprep.subr.bf16.mxu0 0
  %72 = vmatpush1.bf16.msra.mxu0 0
  %73 = vmatprep.subr.bf16.mxu0 0
  %74 = vmatpush1.bf16.msra.mxu0 0
  %75 = vmatprep.subr.bf16.mxu0 0
  %76 = vmatpush1.bf16.msra.mxu0 0
  %77 = vmatprep.subr.bf16.mxu0 0
  %78 = vmatpush1.bf16.msra.mxu0 0
  %79 = vmatprep.subr.bf16.mxu0 0
  %80 = vmatpush1.bf16.msra.mxu0 0
  %81 = vmatprep.mubr.bf16.mxu0 0
  %82 = vmatmul.mubr.bf16.gmra.mrb[0].mxu0 %v47
  %v83 = vpop.f32.mrb[0].mxu0
  %v84 = vadd.f32 %v31, %v83
  %v85 = vpop.f32.mrb[0].mxu0
  %v86 = vpop.f32.mrb[0].mxu0
  %v87 = vpop.f32.mrb[0].mxu0
  %88 = vdwg.mxu0
  %v89 = vmax.f32 %v84, 0.0
  %v90 = vpack.c.bf16 %v89, %v89
  %v91 = vld [vmem:[%s3] sm:$0xf]
  %v92 = vld [vmem:[%s3 + $0x4] sm:$0xf]
  %v93 = vld [vmem:[%s3 + $0x8] sm:$0xf]
  %v94 = vld [vmem:[%s3 + $0xc] sm:$0xf]
  %v95 = vld [vmem:[%s4] sm:$0x1]
  %v97 = vlaneseq
  %v98 = vshrl.u32 %v97, 7
  %v99 = vsub.s32 0, %v98
  %v100 = vrot.slane %v95, %v99
  %v106 = vunpack.c.l.b16 %v91
  %v107 = vunpack.c.l.b16 %v92
  %v108 = vunpack.c.l.b16 %v93
  %v109 = vunpack.c.l.b16 %v94
  %v110 = vpack.c.b16 %v107, %v106
  %v111 = vpack.c.b16 %v109, %v108
  %v115 = vsel %vm45, %v90, 0
  %117 = vmatprep.subr.bf16.mxu0 0
  %118 = vmatpush1.bf16.msra.mxu0 %v110
  %119 = vmatprep.subr.bf16.mxu0 0
  %120 = vmatpush1.bf16.msra.mxu0 %v111
  %121 = vmatprep.subr.bf16.mxu0 0
  %122 = vmatpush1.bf16.msra.mxu0 0
  %123 = vmatprep.subr.bf16.mxu0 0
  %124 = vmatpush1.bf16.msra.mxu0 0
  %125 = vmatprep.subr.bf16.mxu0 0
  %126 = vmatpush1.bf16.msra.mxu0 0
  %127 = vmatprep.subr.bf16.mxu0 0
  %128 = vmatpush1.bf16.msra.mxu0 0
  %129 = vmatprep.subr.bf16.mxu0 0
  %130 = vmatpush1.bf16.msra.mxu0 0
  %131 = vmatprep.subr.bf16.mxu0 0
  %132 = vmatpush1.bf16.msra.mxu0 0
  %133 = vmatprep.subr.bf16.mxu0 0
  %134 = vmatpush1.bf16.msra.mxu0 0
  %135 = vmatprep.subr.bf16.mxu0 0
  %136 = vmatpush1.bf16.msra.mxu0 0
  %137 = vmatprep.subr.bf16.mxu0 0
  %138 = vmatpush1.bf16.msra.mxu0 0
  %139 = vmatprep.subr.bf16.mxu0 0
  %140 = vmatpush1.bf16.msra.mxu0 0
  %141 = vmatprep.subr.bf16.mxu0 0
  %142 = vmatpush1.bf16.msra.mxu0 0
  %143 = vmatprep.subr.bf16.mxu0 0
  %144 = vmatpush1.bf16.msra.mxu0 0
  %145 = vmatprep.subr.bf16.mxu0 0
  %146 = vmatpush1.bf16.msra.mxu0 0
  %147 = vmatprep.subr.bf16.mxu0 0
  %148 = vmatpush1.bf16.msra.mxu0 0
  %149 = vmatprep.mubr.bf16.mxu0 0
  %150 = vmatmul.mubr.bf16.gmra.mrb[0].mxu0 %v115
  %v151 = vpop.f32.mrb[0].mxu0
  %v152 = vadd.f32 %v100, %v151
  %v153 = vpop.f32.mrb[0].mxu0
  %v154 = vpop.f32.mrb[0].mxu0
  %v155 = vpop.f32.mrb[0].mxu0
  %156 = vdwg.mxu0
  %vm157 = vcmask 15360
  %158 = vst.msk [vmem:[%s5] sm:$0xff] %vm157, %v152
  // Predicated region
  $region22: #{tpu_custom_call.1} parent=0 // pred_check
    _
  $region23: #{tpu_custom_call.1} parent=0 // pred_check_branch
    %160 = sbr.rel (0) target = $region25
  $region24: #{tpu_custom_call.1} parent=0 // pred_region
    _
  $region25: #{tpu_custom_call.1} parent=0 // pred_fallthru
    _
  // Predicated region
  $region26: #{tpu_custom_call.1} parent=0 // pred_check
    _
  $region27: #{tpu_custom_call.1} parent=0 // pred_check_branch
    %162 = sbr.rel (0) target = $region29
  $region28: #{tpu_custom_call.1} parent=0 // pred_region
    _
  $region29: #{tpu_custom_call.1} parent=0 // pred_fallthru
    _

</llo_original>
